<compile_context>
chip_gen: v7x
topology: tpu7x:2x2x1
jax: 0.10.0
libtpu: 0.0.40
codegen_flags: <defaults>
</compile_context>

<pallas_src>
import functools
import math

import jax
import jax.numpy as jnp
from jax import lax
from jax.experimental import pallas as pl
from jax.experimental.pallas import tpu as pltpu

MAX_VQA_LENGTH = 20  # from the reference module (unused: no real tokenizer here)


def _round_up(x, m):
    return ((x + m - 1) // m) * m


# ---------------------------------------------------------------------------
# Pallas kernel: the logit_fc head (one batch tile per grid step)
# ---------------------------------------------------------------------------
def _logit_fc_kernel(x_ref, w1_ref, b1_ref, g_ref, beta_ref, w2_ref, b2_ref,
                     out_ref, *, inv_n, n_true, n_pad, exact_gelu):
    # Linear(hid -> 2*hid): bf16 operands, f32 accumulation on the MXU.
    h = jnp.dot(x_ref[...], w1_ref[...], preferred_element_type=jnp.float32)
    h = h + b1_ref[...]

    # GeLU.  Padded columns of h are exactly zero (zero-padded x / w1 / b1)
    # and gelu(0) == 0, so the LN sums below stay correct with inv_n = 1/h2.
    if exact_gelu:
        h = h * 0.5 * (1.0 + lax.erf(h * (1.0 / math.sqrt(2.0))))
    else:
        # tanh approximation: transcendental rides the EUP slot instead of a
        # long erf polynomial on the VALU (max |err| vs erf ~1e-3).
        c0 = 0.7978845608028654  # sqrt(2/pi)
        h = 0.5 * h * (1.0 + jnp.tanh(c0 * (h + 0.044715 * (h * h * h))))

    # BertLayerNorm(2*hid, eps=1e-12): two-pass stats over the TRUE feature
    # count (numerically stable vs E[x^2]-u^2).
    u = jnp.sum(h, axis=-1, keepdims=True) * inv_n
    d = h - u
    if n_pad != n_true:
        # Zero the padded columns so they do not pollute the variance and so
        # the second matmul's input stays zero in the padded lanes.
        col = lax.broadcasted_iota(jnp.int32, (1, n_pad), 1)
        d = jnp.where(col < n_true, d, 0.0)
    s = jnp.sum(d * d, axis=-1, keepdims=True) * inv_n
    scale = g_ref[...] * lax.rsqrt(s + 1e-12)       # gamma folded into rsqrt scale
    # Fused LN affine + bf16 downcast: single elementwise pass.
    hb = (d * scale + beta_ref[...]).astype(w2_ref.dtype)

    # Linear(2*hid -> num_blocks), bf16 operands, f32 accumulation.
    out = jnp.dot(hb, w2_ref[...], preferred_element_type=jnp.float32) + b2_ref[...]
    out_ref[...] = out.astype(out_ref.dtype)


# ---------------------------------------------------------------------------
# One-time parameter preparation (hoisted out of the per-forward path)
# ---------------------------------------------------------------------------
def prepare_logit_fc_params(w1, b1, gamma, beta, w2, b2):
    """Lane-pad + cast the head parameters ONCE; reuse every forward call."""
    hid, h2 = w1.shape
    nb = w2.shape[1]
    hp = _round_up(hid, 128)
    h2p = _round_up(h2, 128)
    nbp = _round_up(nb, 128)
    prepared = {
        "w1": jnp.pad(w1.astype(jnp.bfloat16), ((0, hp - hid), (0, h2p - h2))),
        "b1": jnp.pad(b1.astype(jnp.float32), (0, h2p - h2)).reshape(1, h2p),
        "gamma": jnp.pad(gamma.astype(jnp.float32), (0, h2p - h2)).reshape(1, h2p),
        "beta": jnp.pad(beta.astype(jnp.float32), (0, h2p - h2)).reshape(1, h2p),
        "w2": jnp.pad(w2.astype(jnp.bfloat16), ((0, h2p - h2), (0, nbp - nb))),
        "b2": jnp.pad(b2.astype(jnp.float32), (0, nbp - nb)).reshape(1, nbp),
    }
    dims = {"hid": hid, "h2": h2, "nb": nb, "hp": hp, "h2p": h2p, "nbp": nbp}
    return prepared, dims


def _choose_batch_tile(b, max_block_b):
    # Aim for >=2 grid steps (both v7x TensorCores busy, DMA pipelined),
    # tile a multiple of 8 sublanes, capped at max_block_b.
    tb = _round_up(max(1, (b + 1) // 2), 8)
    return max(8, min(max_block_b, tb))


def logit_fc_pallas(x, prepared, dims, *, max_block_b=512, exact_gelu=False):
    """x: (b, hid) float32 -> logits (b, num_blocks) float32."""
    b, hid = x.shape
    assert hid == dims["hid"]
    h2, nb = dims["h2"], dims["nb"]
    hp, h2p, nbp = dims["hp"], dims["h2p"], dims["nbp"]

    tb = _choose_batch_tile(b, max_block_b)
    bp = _round_up(b, tb)
    grid = (bp // tb,)

    xp = x.astype(jnp.bfloat16)
    if bp != b or hp != hid:
        xp = jnp.pad(xp, ((0, bp - b), (0, hp - hid)))

    # Explicit VMEM budget from the actual padded shapes (double-buffered
    # tiles + resident weights + f32 intermediates), generous 2x margin.
    vmem_bytes = (
        2 * tb * hp * 2                       # x tile (bf16) x2 buffers
        + 2 * tb * nbp * 4                    # out tile (f32) x2 buffers
        + 2 * (hp * h2p + h2p * nbp) * 2      # weights (bf16) x2 buffers
        + 2 * (4 * h2p + nbp) * 4             # biases / LN params
        + 3 * tb * h2p * 4                    # f32 h / d intermediates
    )
    vmem_limit = int(min(max(2 * vmem_bytes, 16 * 1024 * 1024),
                         48 * 1024 * 1024))

    cost = pl.CostEstimate(
        flops=2 * bp * hp * h2p + 2 * bp * h2p * nbp,
        transcendentals=bp * h2p + bp,
        bytes_accessed=(bp * hp * 2 + hp * h2p * 2 + h2p * nbp * 2
                        + (4 * h2p + nbp) * 4 + bp * nbp * 4),
    )

    kernel = functools.partial(
        _logit_fc_kernel,
        inv_n=1.0 / float(h2), n_true=h2, n_pad=h2p, exact_gelu=exact_gelu)

    out = pl.pallas_call(
        kernel,
        out_shape=jax.ShapeDtypeStruct((bp, nbp), jnp.float32),
        grid=grid,
        in_specs=[
            pl.BlockSpec((tb, hp), lambda i: (i, 0)),     # x: tiled over batch
            pl.BlockSpec((hp, h2p), lambda i: (0, 0)),    # w1: VMEM-resident
            pl.BlockSpec((1, h2p), lambda i: (0, 0)),     # b1
            pl.BlockSpec((1, h2p), lambda i: (0, 0)),     # gamma
            pl.BlockSpec((1, h2p), lambda i: (0, 0)),     # beta
            pl.BlockSpec((h2p, nbp), lambda i: (0, 0)),   # w2: VMEM-resident
            pl.BlockSpec((1, nbp), lambda i: (0, 0)),     # b2
        ],
        out_specs=pl.BlockSpec((tb, nbp), lambda i: (i, 0)),
        compiler_params=pltpu.CompilerParams(
            dimension_semantics=("parallel",),
            vmem_limit_bytes=vmem_limit),
        cost_estimate=cost,
    )(xp, prepared["w1"], prepared["b1"], prepared["gamma"],
      prepared["beta"], prepared["w2"], prepared["b2"])

    if bp == b and nbp == nb:
        return out
    return out[:b, :nb]


# ---------------------------------------------------------------------------
# Plain-JAX glue: deterministic stand-in for PolicyLXRTEncoder
# ---------------------------------------------------------------------------
def encoder_stub(feat, pos, w_enc, b_enc):
    # (b, o, f) ++ (b, o, 4) -> mean over objects -> linear -> tanh pool
    v = jnp.concatenate([feat, pos], axis=-1)          # (b, o, f + 4)
    pooled = jnp.mean(v, axis=1)                       # (b, f + 4)
    return jnp.tanh(pooled @ w_enc + b_enc)            # (b, hid)


def make_policy_forward(params, *, max_block_b=512, exact_gelu=False):
    """Pre-pads / pre-casts the head weights once and returns a jitted
    forward(feat, pos): encoder stub, x pad/cast and the Pallas head share a
    single dispatch (no per-call weight padding, no HBM round-trip of x)."""
    prepared, dims = prepare_logit_fc_params(
        params["w1"], params["b1"], params["gamma"], params["beta"],
        params["w2"], params["b2"])

    @jax.jit
    def forward(feat, pos):
        x = encoder_stub(feat, pos, params["w_enc"], params["b_enc"])
        return logit_fc_pallas(x, prepared, dims,
                               max_block_b=max_block_b, exact_gelu=exact_gelu)

    return forward


def policy_lxrt_forward(feat, pos, sent, forward_fn):
    del sent  # strings: tokenization not translatable (see TODO above)
    return forward_fn(feat, pos)


# ---------------------------------------------------------------------------
# Deterministic parameter init (mirrors init_bert_weights: N(0, 0.02) weights,
# zero biases, LayerNorm gamma=1 beta=0).
# ---------------------------------------------------------------------------
def make_params(key, feat_dim, hid, num_blocks):
    k_enc, k_w1, k_w2 = jax.random.split(key, 3)
    return {
        "w_enc": 0.02 * jax.random.normal(k_enc, (feat_dim + 4, hid), jnp.float32),
        "b_enc": jnp.zeros((hid,), jnp.float32),
        "w1": 0.02 * jax.random.normal(k_w1, (hid, 2 * hid), jnp.float32),
        "b1": jnp.zeros((2 * hid,), jnp.float32),
        "gamma": jnp.ones((2 * hid,), jnp.float32),
        "beta": jnp.zeros((2 * hid,), jnp.float32),
        "w2": 0.02 * jax.random.normal(k_w2, (2 * hid, num_blocks), jnp.float32),
        "b2": jnp.zeros((num_blocks,), jnp.float32),
    }


if __name__ == "__main__":
    b, o, f = 2, 8, 16        # batch, object_number, visual_feature_size
    hid = 32                  # encoder hidden dim
    num_blocks = 8

    key = jax.random.PRNGKey(0)
    k_feat, k_pos, k_params = jax.random.split(key, 3)

    feat = jax.random.normal(k_feat, (b, o, f), jnp.float32)
    pos = jax.random.uniform(k_pos, (b, o, 4), jnp.float32)
    sent = ["what color is the block?"] * b   # placeholder strings (unused)

    params = make_params(k_params, f, hid, num_blocks)
    forward_fn = make_policy_forward(params)

    logit = policy_lxrt_forward(feat, pos, sent, forward_fn)
    logit = jax.block_until_ready(logit)
    assert logit.shape == (b, num_blocks)

    # Pure-JAX reference for the kernel head, mirroring the kernel's bf16
    # operand quantization and tanh-approx GeLU (accumulation in f32).
    x = encoder_stub(feat, pos, params["w_enc"], params["b_enc"])
    xb = x.astype(jnp.bfloat16).astype(jnp.float32)
    w1b = params["w1"].astype(jnp.bfloat16).astype(jnp.float32)
    w2b = params["w2"].astype(jnp.bfloat16).astype(jnp.float32)
    h = xb @ w1b + params["b1"]
    h = 0.5 * h * (1.0 + jnp.tanh(0.7978845608028654 * (h + 0.044715 * h ** 3)))
    u = h.mean(-1, keepdims=True)
    s = ((h - u) ** 2).mean(-1, keepdims=True)
    h = (h - u) / jnp.sqrt(s + 1e-12) * params["gamma"] + params["beta"]
    hb = h.astype(jnp.bfloat16).astype(jnp.float32)
    ref = hb @ w2b + params["b2"]
    assert jnp.allclose(logit, ref, atol=2e-3, rtol=2e-3), "mismatch vs reference"

    print("KERNEL_OK")
</pallas_src>

<mosaic_0001>
module attributes {stable_mosaic.version = 11 : i64} {
  func.func @_logit_fc_kernel(%arg0: i32, %arg1: memref<8x128xbf16, #tpu.memory_space<vmem>>, %arg2: memref<128x128xbf16, #tpu.memory_space<vmem>>, %arg3: memref<1x128xf32, #tpu.memory_space<vmem>>, %arg4: memref<1x128xf32, #tpu.memory_space<vmem>>, %arg5: memref<1x128xf32, #tpu.memory_space<vmem>>, %arg6: memref<128x128xbf16, #tpu.memory_space<vmem>>, %arg7: memref<1x128xf32, #tpu.memory_space<vmem>>, %arg8: memref<8x128xf32, #tpu.memory_space<vmem>>) attributes {dimension_semantics = [#tpu.dimension_semantics<parallel>], iteration_bounds = array<i64: 1>, scalar_prefetch = 0 : i64, scratch_operands = 0 : i64, tpu.core_type = #tpu.core_type<tc>, window_params = [{transform_indices = @transform_0, window_bounds = array<i64: 8, 128>}, {pipeline_mode = #tpu.pipeline_mode<synchronous>, transform_indices = @transform_1, window_bounds = array<i64: 128, 128>}, {pipeline_mode = #tpu.pipeline_mode<synchronous>, transform_indices = @transform_2, window_bounds = array<i64: 1, 128>}, {pipeline_mode = #tpu.pipeline_mode<synchronous>, transform_indices = @transform_3, window_bounds = array<i64: 1, 128>}, {pipeline_mode = #tpu.pipeline_mode<synchronous>, transform_indices = @transform_4, window_bounds = array<i64: 1, 128>}, {pipeline_mode = #tpu.pipeline_mode<synchronous>, transform_indices = @transform_5, window_bounds = array<i64: 128, 128>}, {pipeline_mode = #tpu.pipeline_mode<synchronous>, transform_indices = @transform_6, window_bounds = array<i64: 1, 128>}, {transform_indices = @transform_7, window_bounds = array<i64: 8, 128>}]} {
    %c0 = arith.constant 0 : index
    %c0_0 = arith.constant 0 : index
    %0 = vector.load %arg1[%c0, %c0_0] : memref<8x128xbf16, #tpu.memory_space<vmem>>, vector<8x128xbf16>
    %c0_1 = arith.constant 0 : index
    %c0_2 = arith.constant 0 : index
    %1 = vector.load %arg2[%c0_1, %c0_2] : memref<128x128xbf16, #tpu.memory_space<vmem>>, vector<128x128xbf16>
    %cst = arith.constant dense<0.000000e+00> : vector<8x128xf32>
    %2 = tpu.matmul %0, %1, %cst {dimension_numbers = #tpu.dot_dimension_numbers<[1], [0], [0], [1], [0, 0, 1, 1], [], []>} : vector<8x128xbf16>, vector<128x128xbf16>, vector<8x128xf32> -> vector<8x128xf32>
    %c0_3 = arith.constant 0 : index
    %c0_4 = arith.constant 0 : index
    %3 = vector.load %arg3[%c0_3, %c0_4] : memref<1x128xf32, #tpu.memory_space<vmem>>, vector<1x128xf32>
    %4 = vector.broadcast %3 : vector<1x128xf32> to vector<8x128xf32>
    %5 = arith.addf %2, %4 : vector<8x128xf32>
    %cst_5 = arith.constant 5.000000e-01 : f32
    %6 = vector.broadcast %cst_5 : f32 to vector<8x128xf32>
    %7 = arith.mulf %6, %5 : vector<8x128xf32>
    %8 = arith.mulf %5, %5 : vector<8x128xf32>
    %9 = arith.mulf %8, %5 : vector<8x128xf32>
    %cst_6 = arith.constant 4.471500e-02 : f32
    %10 = vector.broadcast %cst_6 : f32 to vector<8x128xf32>
    %11 = arith.mulf %10, %9 : vector<8x128xf32>
    %12 = arith.addf %5, %11 : vector<8x128xf32>
    %cst_7 = arith.constant 0.797884583 : f32
    %13 = vector.broadcast %cst_7 : f32 to vector<8x128xf32>
    %14 = arith.mulf %13, %12 : vector<8x128xf32>
    %15 = math.tanh %14 : vector<8x128xf32>
    %cst_8 = arith.constant 1.000000e+00 : f32
    %16 = vector.broadcast %cst_8 : f32 to vector<8x128xf32>
    %17 = arith.addf %16, %15 : vector<8x128xf32>
    %18 = arith.mulf %7, %17 : vector<8x128xf32>
    %cst_9 = arith.constant dense<0.000000e+00> : vector<8xf32>
    %19 = vector.multi_reduction <add>, %18, %cst_9 [1] : vector<8x128xf32> to vector<8xf32>
    %20 = vector.shape_cast %19 : vector<8xf32> to vector<8x1xf32>
    %cst_10 = arith.constant 1.562500e-02 : f32
    %21 = vector.broadcast %cst_10 : f32 to vector<8x1xf32>
    %22 = arith.mulf %20, %21 : vector<8x1xf32>
    %23 = vector.broadcast %22 : vector<8x1xf32> to vector<8x128xf32>
    %24 = arith.subf %18, %23 : vector<8x128xf32>
    %25 = tpu.iota {dimensions = array<i32: 1>} : vector<1x128xi32>
    %c64_i32 = arith.constant 64 : i32
    %26 = vector.broadcast %c64_i32 : i32 to vector<1x128xi32>
    %27 = arith.cmpi slt, %25, %26 : vector<1x128xi32>
    %cst_11 = arith.constant 0.000000e+00 : f32
    %28 = vector.shape_cast %27 : vector<1x128xi1> to vector<1x128xi1>
    %29 = vector.broadcast %28 : vector<1x128xi1> to vector<8x128xi1>
    %30 = vector.broadcast %cst_11 : f32 to vector<8x128xf32>
    %31 = arith.select %29, %24, %30 : vector<8x128xi1>, vector<8x128xf32>
    %32 = arith.mulf %31, %31 : vector<8x128xf32>
    %cst_12 = arith.constant dense<0.000000e+00> : vector<8xf32>
    %33 = vector.multi_reduction <add>, %32, %cst_12 [1] : vector<8x128xf32> to vector<8xf32>
    %34 = vector.shape_cast %33 : vector<8xf32> to vector<8x1xf32>
    %cst_13 = arith.constant 1.562500e-02 : f32
    %35 = vector.broadcast %cst_13 : f32 to vector<8x1xf32>
    %36 = arith.mulf %34, %35 : vector<8x1xf32>
    %c0_14 = arith.constant 0 : index
    %c0_15 = arith.constant 0 : index
    %37 = vector.load %arg4[%c0_14, %c0_15] : memref<1x128xf32, #tpu.memory_space<vmem>>, vector<1x128xf32>
    %cst_16 = arith.constant 9.99999996E-13 : f32
    %38 = vector.broadcast %cst_16 : f32 to vector<8x1xf32>
    %39 = arith.addf %36, %38 : vector<8x1xf32>
    %40 = math.rsqrt %39 : vector<8x1xf32>
    %41 = vector.broadcast %37 : vector<1x128xf32> to vector<8x128xf32>
    %42 = vector.broadcast %40 : vector<8x1xf32> to vector<8x128xf32>
    %43 = arith.mulf %41, %42 : vector<8x128xf32>
    %44 = arith.mulf %31, %43 : vector<8x128xf32>
    %c0_17 = arith.constant 0 : index
    %c0_18 = arith.constant 0 : index
    %45 = vector.load %arg5[%c0_17, %c0_18] : memref<1x128xf32, #tpu.memory_space<vmem>>, vector<1x128xf32>
    %46 = vector.broadcast %45 : vector<1x128xf32> to vector<8x128xf32>
    %47 = arith.addf %44, %46 : vector<8x128xf32>
    %48 = arith.truncf %47 : vector<8x128xf32> to vector<8x128xbf16>
    %c0_19 = arith.constant 0 : index
    %c0_20 = arith.constant 0 : index
    %49 = vector.load %arg6[%c0_19, %c0_20] : memref<128x128xbf16, #tpu.memory_space<vmem>>, vector<128x128xbf16>
    %cst_21 = arith.constant dense<0.000000e+00> : vector<8x128xf32>
    %50 = tpu.matmul %48, %49, %cst_21 {dimension_numbers = #tpu.dot_dimension_numbers<[1], [0], [0], [1], [0, 0, 1, 1], [], []>} : vector<8x128xbf16>, vector<128x128xbf16>, vector<8x128xf32> -> vector<8x128xf32>
    %c0_22 = arith.constant 0 : index
    %c0_23 = arith.constant 0 : index
    %51 = vector.load %arg7[%c0_22, %c0_23] : memref<1x128xf32, #tpu.memory_space<vmem>>, vector<1x128xf32>
    %52 = vector.broadcast %51 : vector<1x128xf32> to vector<8x128xf32>
    %53 = arith.addf %50, %52 : vector<8x128xf32>
    %c0_24 = arith.constant 0 : index
    %c0_25 = arith.constant 0 : index
    %54 = vector.load %arg8[%c0_24, %c0_25] : memref<8x128xf32, #tpu.memory_space<vmem>>, vector<8x128xf32>
    tpu.vector_store %arg8[%c0_24, %c0_25], %53 {strides = array<i32>} : memref<8x128xf32, #tpu.memory_space<vmem>>, vector<8x128xf32>,
    return
  }
  func.func @transform_0(%arg0: i32) -> (i32, i32) {
    %c0_i32 = arith.constant 0 : i32
    %c0_i32_0 = arith.constant 0 : i32
    return %arg0, %c0_i32 : i32, i32
  }
  func.func @transform_1(%arg0: i32) -> (i32, i32) {
    %c0_i32 = arith.constant 0 : i32
    %c0_i32_0 = arith.constant 0 : i32
    %c0_i32_1 = arith.constant 0 : i32
    return %c0_i32, %c0_i32_0 : i32, i32
  }
  func.func @transform_2(%arg0: i32) -> (i32, i32) {
    %c0_i32 = arith.constant 0 : i32
    %c0_i32_0 = arith.constant 0 : i32
    %c0_i32_1 = arith.constant 0 : i32
    return %c0_i32, %c0_i32_0 : i32, i32
  }
  func.func @transform_3(%arg0: i32) -> (i32, i32) {
    %c0_i32 = arith.constant 0 : i32
    %c0_i32_0 = arith.constant 0 : i32
    %c0_i32_1 = arith.constant 0 : i32
    return %c0_i32, %c0_i32_0 : i32, i32
  }
  func.func @transform_4(%arg0: i32) -> (i32, i32) {
    %c0_i32 = arith.constant 0 : i32
    %c0_i32_0 = arith.constant 0 : i32
    %c0_i32_1 = arith.constant 0 : i32
    return %c0_i32, %c0_i32_0 : i32, i32
  }
  func.func @transform_5(%arg0: i32) -> (i32, i32) {
    %c0_i32 = arith.constant 0 : i32
    %c0_i32_0 = arith.constant 0 : i32
    %c0_i32_1 = arith.constant 0 : i32
    return %c0_i32, %c0_i32_0 : i32, i32
  }
  func.func @transform_6(%arg0: i32) -> (i32, i32) {
    %c0_i32 = arith.constant 0 : i32
    %c0_i32_0 = arith.constant 0 : i32
    %c0_i32_1 = arith.constant 0 : i32
    return %c0_i32, %c0_i32_0 : i32, i32
  }
  func.func @transform_7(%arg0: i32) -> (i32, i32) {
    %c0_i32 = arith.constant 0 : i32
    %c0_i32_0 = arith.constant 0 : i32
    return %arg0, %c0_i32 : i32, i32
  }
}

</mosaic_0001>

<llo_original>
// kernel: forward.1
$region0: #{forward.1}
  #allocation0 [shape = 'u32[]', space=smem, size = 0x4, offset = 0x4, fixed_abs, tag = 'smem constant byte address 0x4 - core index']
  #allocation1 [shape = 'u32[144,128]{1,0:T(1,128)}', space=vmem, size = 0x12000, scoped, tag = 'internal scratch']
  %s0 = inlined_call_operand.vmem [shape: bf16[8,128], index: 0, kind: input, shape index: {}]
  %s1 = inlined_call_operand.vmem [shape: bf16[128,128], index: 1, kind: input, shape index: {}]
  %s2 = inlined_call_operand.vmem [shape: f32[1,128], index: 2, kind: input, shape index: {}, may-alias: {2,4,6}]
  %s3 = inlined_call_operand.vmem [shape: f32[1,128], index: 3, kind: input, shape index: {}]
  %s4 = inlined_call_operand.vmem [shape: f32[1,128], index: 4, kind: input, shape index: {}, may-alias: {2,4,6}]
  %s5 = inlined_call_operand.hbm [shape: bf16[128,128], index: 5, kind: input, shape index: {}]
  %s6 = inlined_call_operand.vmem [shape: f32[1,128], index: 6, kind: input, shape index: {}, may-alias: {2,4,6}]
  %s7 = inlined_call_operand.vmem [shape: f32[8,128], index: 7, kind: output, shape index: {}]
  %s8 = sld [smem:[#allocation0]]
  $region42: #{forward.1} parent=0
    _
  %s10 = ssub.s32 1, %s8
  %s11 = scalar_select 0, %s10, %s8
  $region1: #{forward.1} parent=0
    #allocation2 [shape = 'u8[32768]{0}', space=vmem, size = 0x8000, scoped, tag = 'input window, operand 5, single buffered']
    #allocation3 [shape = 's32[1]{0}', space=sflag, size = 0x4, scoped, tag = 'scoped memory for forward.1']
    %12 = vsyncpa [#allocation3], 0
    // Predicated region
    $region2: #{forward.1} parent=1 // pred_check
      _
    $region3: #{forward.1} parent=1 // pred_check_branch
      %14 = sbr.rel (0) target = $region5
    $region4: #{forward.1} parent=1 // pred_region
      _
    $region5: #{forward.1} parent=1 // pred_fallthru
      _
    // Predicated region
    $region6: #{forward.1} parent=1 // pred_check
      _
    $region7: #{forward.1} parent=1 // pred_check_branch
      %16 = sbr.rel (0) target = $region9
    $region8: #{forward.1} parent=1 // pred_region
      _
    $region9: #{forward.1} parent=1 // pred_fallthru
      _
    // Predicated region
    $region10: #{forward.1} parent=1 // pred_check
      _
    $region11: #{forward.1} parent=1 // pred_check_branch
      %18 = sbr.rel (0) target = $region13
    $region12: #{forward.1} parent=1 // pred_region
      _
    $region13: #{forward.1} parent=1 // pred_fallthru
      _
    // Predicated region
    $region14: #{forward.1} parent=1 // pred_check
      _
    $region15: #{forward.1} parent=1 // pred_check_branch
      %20 = sbr.rel (0) target = $region17
    $region16: #{forward.1} parent=1 // pred_region
      _
    $region17: #{forward.1} parent=1 // pred_fallthru
      _
    // Predicated region
    $region18: #{forward.1} parent=1 // pred_check
      _
    $region19: #{forward.1} parent=1 // pred_check_branch
      %22 = sbr.rel (0) target = $region21
    $region20: #{forward.1} parent=1 // pred_region
      _
    $region21: #{forward.1} parent=1 // pred_fallthru
      _
    // Predicated region
    $region22: #{forward.1} parent=1 // pred_check
      _
    $region23: #{forward.1} parent=1 // pred_check_branch
      %24 = sbr.rel (0) target = $region25
    $region24: #{forward.1} parent=1 // pred_region
      %s26 = ssub.s32 1024, 1024
      %27 = vsyncadd [#allocation3], %s26
      %s28 = sshll.u32 [#allocation2], 4
      %s29 = int_to_ptr.vmem [resolvable:$true] %s28
      %34 = dma.hbm_to_vmem [thread:$0]  %s5, 1024, %s29, [#allocation3], 64, 64, 4
    $region25: #{forward.1} parent=1 // pred_fallthru
      _
    // Predicated region
    $region26: #{forward.1} parent=1 // pred_check
      _
    $region27: #{forward.1} parent=1 // pred_check_branch
      %36 = sbr.rel (0) target = $region29
    $region28: #{forward.1} parent=1 // pred_region
      _
    $region29: #{forward.1} parent=1 // pred_fallthru
      _
    // Predicated region
    $region30: #{forward.1} parent=1 // pred_check
      _
    $region31: #{forward.1} parent=1 // pred_check_branch
      %38 = sbr.rel (0) target = $region33
    $region32: #{forward.1} parent=1 // pred_region
      %39 = dma.done [#allocation3], 1024
    $region33: #{forward.1} parent=1 // pred_fallthru
      _
    %v41 = vld [vmem:[%s0] sm:$0xf]
    %v42 = vld [vmem:[%s1] sm:$0xf]
    %v43 = vld [vmem:[%s1 + $0x4] sm:$0xf]
    %v44 = vld [vmem:[%s1 + $0x8] sm:$0xf]
    %v45 = vld [vmem:[%s1 + $0xc] sm:$0xf]
    %v46 = vld [vmem:[%s1 + $0x10] sm:$0xf]
    %v47 = vld [vmem:[%s1 + $0x14] sm:$0xf]
    %v48 = vld [vmem:[%s1 + $0x18] sm:$0xf]
    %v49 = vld [vmem:[%s1 + $0x1c] sm:$0xf]
    %v50 = vld [vmem:[%s1 + $0x20] sm:$0xf]
    %v51 = vld [vmem:[%s1 + $0x24] sm:$0xf]
    %v52 = vld [vmem:[%s1 + $0x28] sm:$0xf]
    %v53 = vld [vmem:[%s1 + $0x2c] sm:$0xf]
    %v54 = vld [vmem:[%s1 + $0x30] sm:$0xf]
    %v55 = vld [vmem:[%s1 + $0x34] sm:$0xf]
    %v56 = vld [vmem:[%s1 + $0x38] sm:$0xf]
    %v57 = vld [vmem:[%s1 + $0x3c] sm:$0xf]
    %v58 = vld [vmem:[%s2] sm:$0x1]
    %v60 = vlaneseq
    %v61 = vshrl.u32 %v60, 7
    %v62 = vsub.s32 0, %v61
    %v63 = vrot.slane %v58, %v62
    %v81 = vunpack.c.l.b16 %v42
    %v82 = vunpack.c.l.b16 %v43
    %v83 = vunpack.c.l.b16 %v44
    %v84 = vunpack.c.l.b16 %v45
    %v85 = vunpack.c.l.b16 %v46
    %v86 = vunpack.c.l.b16 %v47
    %v87 = vunpack.c.l.b16 %v48
    %v88 = vunpack.c.l.b16 %v49
    %v89 = vunpack.c.l.b16 %v50
    %v90 = vunpack.c.l.b16 %v51
    %v91 = vunpack.c.l.b16 %v52
    %v92 = vunpack.c.l.b16 %v53
    %v93 = vunpack.c.l.b16 %v54
    %v94 = vunpack.c.l.b16 %v55
    %v95 = vunpack.c.l.b16 %v56
    %v96 = vunpack.c.l.b16 %v57
    %v97 = vpack.c.b16 %v82, %v81
    %v98 = vpack.c.b16 %v84, %v83
    %v99 = vpack.c.b16 %v86, %v85
    %v100 = vpack.c.b16 %v88, %v87
    %v101 = vpack.c.b16 %v90, %v89
    %v102 = vpack.c.b16 %v92, %v91
    %v103 = vpack.c.b16 %v94, %v93
    %v104 = vpack.c.b16 %v96, %v95
    %113 = vmatprep.subr.bf16.mxu0 0
    %114 = vmatpush1.bf16.msra.mxu0 %v97
    %115 = vmatprep.subr.bf16.mxu0 0
    %116 = vmatpush1.bf16.msra.mxu0 %v98
    %117 = vmatprep.subr.bf16.mxu0 0
    %118 = vmatpush1.bf16.msra.mxu0 %v99
    %119 = vmatprep.subr.bf16.mxu0 0
    %120 = vmatpush1.bf16.msra.mxu0 %v100
    %121 = vmatprep.subr.bf16.mxu0 0
    %122 = vmatpush1.bf16.msra.mxu0 %v101
    %123 = vmatprep.subr.bf16.mxu0 0
    %124 = vmatpush1.bf16.msra.mxu0 %v102
    %125 = vmatprep.subr.bf16.mxu0 0
    %126 = vmatpush1.bf16.msra.mxu0 %v103
    %127 = vmatprep.subr.bf16.mxu0 0
    %128 = vmatpush1.bf16.msra.mxu0 %v104
    %129 = vmatprep.subr.bf16.mxu0 0
    %130 = vmatpush1.bf16.msra.mxu0 0
    %131 = vmatprep.subr.bf16.mxu0 0
    %132 = vmatpush1.bf16.msra.mxu0 0
    %133 = vmatprep.subr.bf16.mxu0 0
    %134 = vmatpush1.bf16.msra.mxu0 0
    %135 = vmatprep.subr.bf16.mxu0 0
    %136 = vmatpush1.bf16.msra.mxu0 0
    %137 = vmatprep.subr.bf16.mxu0 0
    %138 = vmatpush1.bf16.msra.mxu0 0
    %139 = vmatprep.subr.bf16.mxu0 0
    %140 = vmatpush1.bf16.msra.mxu0 0
    %141 = vmatprep.subr.bf16.mxu0 0
    %142 = vmatpush1.bf16.msra.mxu0 0
    %143 = vmatprep.subr.bf16.mxu0 0
    %144 = vmatpush1.bf16.msra.mxu0 0
    %145 = vmatprep.mubr.bf16.mxu0 0
    %146 = vmatmul.mubr.bf16.gmra.mrb[0].mxu0 %v41
    %v147 = vpop.f32.mrb[0].mxu0
    %v148 = vadd.f32 %v63, %v147
    %v149 = vpop.f32.mrb[0].mxu0
    %v150 = vpop.f32.mrb[0].mxu0
    %v151 = vpop.f32.mrb[0].mxu0
    %152 = vdwg.mxu0
    %v153 = vmul.f32 %v148, 0.5
    %v154 = vmul.f32 %v148, %v148
    %v155 = vmul.f32 %v154, %v148
    %v156 = vmul.f32 %v155, 0.044715
    %v157 = vadd.f32 %v148, %v156
    %v158 = vmul.f32 %v157, 0.7978846
    %v159 = vtanh.pop %v158
    %v160 = vadd.f32 %v159, 1.0
    %v161 = vmul.f32 %v153, %v160
    %162 = vadd.xlane.f32.xlu0 %v161
    %v163 = vpop.xlane.xlu0 %162
    %v164 = vmul.f32 %v163, 0.015625
    %v165 = vsub.f32 %v161, %v164
    %v166 = vlaneseq
    %v167 = vand.u32 %v166, 127
    %vm168 = vcmp.lt.s32.totalorder %v167, 64
    %v169 = vsel %vm168, 1, 0
    %vm170 = vcmp.eq.s32.totalorder %v169, 1
    %v171 = vsel %vm170, %v165, 0.0
    %v172 = vmul.f32 %v171, %v171
    %173 = vadd.xlane.f32.xlu0 %v172
    %v174 = vpop.xlane.xlu0 %173
    %v175 = vmul.f32 %v174, 0.015625
    %v176 = vld [vmem:[%s3] sm:$0x1]
    %v177 = vadd.f32 %v175, 1e-12
    %v178 = vrsqrt.pop %v177
    %v180 = vlaneseq
    %v181 = vshrl.u32 %v180, 7
    %v182 = vsub.s32 0, %v181
    %v183 = vrot.slane %v176, %v182
    %v185 = vmul.f32 %v183, %v178
    %v186 = vmul.f32 %v171, %v185
    %v187 = vld [vmem:[%s4] sm:$0x1]
    %v189 = vlaneseq
    %v190 = vshrl.u32 %v189, 7
    %v191 = vsub.s32 0, %v190
    %v192 = vrot.slane %v187, %v191
    %v194 = vadd.f32 %v186, %v192
    %v195 = vpack.c.bf16 %v194, %v194
    %v196 = vld [vmem:[#allocation2] sm:$0xf]
    %v197 = vld [vmem:[#allocation2 + $0x4] sm:$0xf]
    %v198 = vld [vmem:[#allocation2 + $0x8] sm:$0xf]
    %v199 = vld [vmem:[#allocation2 + $0xc] sm:$0xf]
    %v200 = vld [vmem:[#allocation2 + $0x10] sm:$0xf]
    %v201 = vld [vmem:[#allocation2 + $0x14] sm:$0xf]
    %v202 = vld [vmem:[#allocation2 + $0x18] sm:$0xf]
    %v203 = vld [vmem:[#allocation2 + $0x1c] sm:$0xf]
    %v204 = vld [vmem:[#allocation2 + $0x20] sm:$0xf]
    %v205 = vld [vmem:[#allocation2 + $0x24] sm:$0xf]
    %v206 = vld [vmem:[#allocation2 + $0x28] sm:$0xf]
    %v207 = vld [vmem:[#allocation2 + $0x2c] sm:$0xf]
    %v208 = vld [vmem:[#allocation2 + $0x30] sm:$0xf]
    %v209 = vld [vmem:[#allocation2 + $0x34] sm:$0xf]
    %v210 = vld [vmem:[#allocation2 + $0x38] sm:$0xf]
    %v211 = vld [vmem:[#allocation2 + $0x3c] sm:$0xf]
    %v212 = vld [vmem:[%s6] sm:$0x1]
    %v214 = vlaneseq
    %v215 = vshrl.u32 %v214, 7
    %v216 = vsub.s32 0, %v215
    %v217 = vrot.slane %v212, %v216
    %v235 = vunpack.c.l.b16 %v196
    %v236 = vunpack.c.l.b16 %v197
    %v237 = vunpack.c.l.b16 %v198
    %v238 = vunpack.c.l.b16 %v199
    %v239 = vunpack.c.l.b16 %v200
    %v240 = vunpack.c.l.b16 %v201
    %v241 = vunpack.c.l.b16 %v202
    %v242 = vunpack.c.l.b16 %v203
    %v243 = vunpack.c.l.b16 %v204
    %v244 = vunpack.c.l.b16 %v205
    %v245 = vunpack.c.l.b16 %v206
    %v246 = vunpack.c.l.b16 %v207
    %v247 = vunpack.c.l.b16 %v208
    %v248 = vunpack.c.l.b16 %v209
    %v249 = vunpack.c.l.b16 %v210
    %v250 = vunpack.c.l.b16 %v211
    %v251 = vpack.c.b16 %v236, %v235
    %v252 = vpack.c.b16 %v238, %v237
    %v253 = vpack.c.b16 %v240, %v239
    %v254 = vpack.c.b16 %v242, %v241
    %v255 = vpack.c.b16 %v244, %v243
    %v256 = vpack.c.b16 %v246, %v245
    %v257 = vpack.c.b16 %v248, %v247
    %v258 = vpack.c.b16 %v250, %v249
    %267 = vmatprep.subr.bf16.mxu0 0
    %268 = vmatpush1.bf16.msra.mxu0 %v251
    %269 = vmatprep.subr.bf16.mxu0 0
    %270 = vmatpush1.bf16.msra.mxu0 %v252
    %271 = vmatprep.subr.bf16.mxu0 0
    %272 = vmatpush1.bf16.msra.mxu0 %v253
    %273 = vmatprep.subr.bf16.mxu0 0
    %274 = vmatpush1.bf16.msra.mxu0 %v254
    %275 = vmatprep.subr.bf16.mxu0 0
    %276 = vmatpush1.bf16.msra.mxu0 %v255
    %277 = vmatprep.subr.bf16.mxu0 0
    %278 = vmatpush1.bf16.msra.mxu0 %v256
    %279 = vmatprep.subr.bf16.mxu0 0
    %280 = vmatpush1.bf16.msra.mxu0 %v257
    %281 = vmatprep.subr.bf16.mxu0 0
    %282 = vmatpush1.bf16.msra.mxu0 %v258
    %283 = vmatprep.subr.bf16.mxu0 0
    %284 = vmatpush1.bf16.msra.mxu0 0
    %285 = vmatprep.subr.bf16.mxu0 0
    %286 = vmatpush1.bf16.msra.mxu0 0
    %287 = vmatprep.subr.bf16.mxu0 0
    %288 = vmatpush1.bf16.msra.mxu0 0
    %289 = vmatprep.subr.bf16.mxu0 0
    %290 = vmatpush1.bf16.msra.mxu0 0
    %291 = vmatprep.subr.bf16.mxu0 0
    %292 = vmatpush1.bf16.msra.mxu0 0
    %293 = vmatprep.subr.bf16.mxu0 0
    %294 = vmatpush1.bf16.msra.mxu0 0
    %295 = vmatprep.subr.bf16.mxu0 0
    %296 = vmatpush1.bf16.msra.mxu0 0
    %297 = vmatprep.subr.bf16.mxu0 0
    %298 = vmatpush1.bf16.msra.mxu0 0
    %299 = vmatprep.mubr.bf16.mxu0 0
    %300 = vmatmul.mubr.bf16.gmra.mrb[0].mxu0 %v195
    %v301 = vpop.f32.mrb[0].mxu0
    %v302 = vadd.f32 %v217, %v301
    %v303 = vpop.f32.mrb[0].mxu0
    %v304 = vpop.f32.mrb[0].mxu0
    %v305 = vpop.f32.mrb[0].mxu0
    %306 = vdwg.mxu0
    %307 = vst [vmem:[%s7] sm:$0xff] %v302
    // Predicated region
    $region34: #{forward.1} parent=1 // pred_check
      _
    $region35: #{forward.1} parent=1 // pred_check_branch
      %309 = sbr.rel (0) target = $region37
    $region36: #{forward.1} parent=1 // pred_region
      _
    $region37: #{forward.1} parent=1 // pred_fallthru
      _
    // Predicated region
    $region38: #{forward.1} parent=1 // pred_check
      _
    $region39: #{forward.1} parent=1 // pred_check_branch
      %311 = sbr.rel (0) target = $region41
    $region40: #{forward.1} parent=1 // pred_region
      _
    $region41: #{forward.1} parent=1 // pred_fallthru
      _
    %312 = vsyncpa [#allocation3], 1

</llo_original>
